<compile_context>
chip_gen: v7x
topology: tpu7x:2x2x1
jax: 0.10.0
libtpu: 0.0.40
codegen_flags: <defaults>
</compile_context>

<pallas_src>
import jax
import jax.numpy as jnp
from jax.experimental import pallas as pl
from jax.experimental.pallas import tpu as pltpu

_MIB = 1024 * 1024


def _round_up(a: int, b: int) -> int:
    return (a + b - 1) // b * b


def _sublane(dtype) -> int:
    # vreg sublane packing: 8 rows for 4-byte, 16 for 2-byte, 32 for 1-byte.
    return {4: 8, 2: 16, 1: 32}.get(jnp.dtype(dtype).itemsize, 8)


def _vmem_capacity_bytes() -> int:
    try:
        info = pltpu.get_tpu_info()
        cap = int(getattr(info, "vmem_capacity_bytes", 0) or 0)
        if cap > 0:
            return cap
    except Exception:
        pass
    return 64 * _MIB  # conservative default (v7x per-core VMEM)


def _vmem_budget_bytes() -> int:
    cap = _vmem_capacity_bytes()
    if cap >= 96 * _MIB:            # v5e / v6e: 128 MiB physical
        return 100 * _MIB
    return max(cap - 20 * _MIB, cap // 2)   # v7x: 64 MiB -> ~44 MiB


def _vmem_limit(estimate: int, cap: int) -> int:
    # Enough headroom over the estimate, but always well under physical VMEM
    # so Mosaic internal scratch / semaphores still fit (critical on v7x).
    return int(min(max(estimate * 1.3, 32 * _MIB), cap - 8 * _MIB))


def _tile_k_candidates(d_model: int):
    """Divisors of d_model usable as contraction slabs (full D, or 256/128-
    aligned divisors) — avoids any wrapper-side weight padding."""
    cands = {d_model}
    for align in (256, 128):
        t = align
        while t < d_model:
            if d_model % t == 0:
                cands.add(t)
            t += align
    return sorted(cands, reverse=True)


def _fused_vmem_bytes(tm, tk, V, xb, wb, ob, needs_acc):
    n = (2 * tm * tk * xb      # x tile (double buffered)
         + 2 * tk * V * wb     # weight K-slab
         + 2 * V * 4           # bias (f32)
         + 2 * tm * V * ob)    # output tile
    if needs_acc:
        n += tm * V * 4        # f32 accumulator scratch
    return n


def _vtiled_vmem_bytes(tm, tk, tv, xb, wb):
    return (2 * tm * tk * xb       # x tile
            + 2 * tk * tv * wb     # weight (K, V) tile
            + 2 * tv * 4           # bias tile (f32)
            + 2 * tm * tv * 4      # logits output tile (f32)
            + 2 * tm * 4           # lse output
            + tm * tv * 4          # f32 accumulator scratch
            + 2 * tm * 4)          # running max / sum scratch


# --------------------------------------------------------------------------
# Kernels
# --------------------------------------------------------------------------
def _fused_kernel_f32out(x_ref, w_ref, b_ref, o_ref):
    """Fused matmul + bias + log_softmax; f32 output block is the accumulator."""
    k = pl.program_id(1)

    @pl.when(k == 0)
    def _():
        # Fold the bias into the accumulator init (saves an epilogue add).
        o_ref[...] = jnp.broadcast_to(b_ref[...], o_ref.shape)

    o_ref[...] += jnp.dot(x_ref[...], w_ref[...],
                          preferred_element_type=jnp.float32)

    @pl.when(k == pl.num_programs(1) - 1)
    def _():
        logits = o_ref[...]
        m = jnp.max(logits, axis=-1, keepdims=True)
        shifted = logits - m
        lse = jnp.log(jnp.sum(jnp.exp(shifted), axis=-1, keepdims=True))
        o_ref[...] = shifted - lse


def _fused_kernel_acc(x_ref, w_ref, b_ref, o_ref, acc_ref):
    """Same as above but with an explicit f32 scratch (non-f32 output dtype)."""
    k = pl.program_id(1)

    @pl.when(k == 0)
    def _():
        acc_ref[...] = jnp.broadcast_to(b_ref[...], acc_ref.shape)

    acc_ref[...] += jnp.dot(x_ref[...], w_ref[...],
                            preferred_element_type=jnp.float32)

    @pl.when(k == pl.num_programs(1) - 1)
    def _():
        logits = acc_ref[...]
        m = jnp.max(logits, axis=-1, keepdims=True)
        shifted = logits - m
        lse = jnp.log(jnp.sum(jnp.exp(shifted), axis=-1, keepdims=True))
        o_ref[...] = (shifted - lse).astype(o_ref.dtype)


def _vtiled_kernel(x_ref, w_ref, b_ref, logits_ref, lse_ref,
                   acc_ref, m_ref, l_ref):
    """Vocab-tiled logits + online (running max / sum-exp) logsumexp."""
    j = pl.program_id(1)
    k = pl.program_id(2)
    nj = pl.num_programs(1)
    nk = pl.num_programs(2)

    @pl.when(jnp.logical_and(j == 0, k == 0))
    def _():
        m_ref[...] = jnp.full(m_ref.shape, -jnp.inf, dtype=m_ref.dtype)
        l_ref[...] = jnp.zeros(l_ref.shape, dtype=l_ref.dtype)

    @pl.when(k == 0)
    def _():
        acc_ref[...] = jnp.broadcast_to(b_ref[...], acc_ref.shape)

    acc_ref[...] += jnp.dot(x_ref[...], w_ref[...],
                            preferred_element_type=jnp.float32)

    @pl.when(k == nk - 1)
    def _():
        logits = acc_ref[...]
        logits_ref[...] = logits
        m_new = jnp.maximum(m_ref[...], jnp.max(logits, axis=-1, keepdims=True))
        l_ref[...] = (l_ref[...] * jnp.exp(m_ref[...] - m_new)
                      + jnp.sum(jnp.exp(logits - m_new), axis=-1, keepdims=True))
        m_ref[...] = m_new

    @pl.when(jnp.logical_and(k == nk - 1, j == nj - 1))
    def _():
        lse_ref[...] = m_ref[...] + jnp.log(l_ref[...])


def _normalize_kernel(logits_ref, lse_ref, o_ref):
    o_ref[...] = (logits_ref[...] - lse_ref[...]).astype(o_ref.dtype)


# --------------------------------------------------------------------------
# Wrapper
# --------------------------------------------------------------------------
def generator_forward(x, w, b, *, compute_dtype=None,
                      tile_m=None, tile_k=None, tile_v=None,
                      force_v_tiled=False):
    """log_softmax(x @ w + b, axis=-1).  x: [..., D], w: [D, V], b: [V]."""
    orig_shape = x.shape
    D = orig_shape[-1]
    V = w.shape[1]
    M = 1
    for s in orig_shape[:-1]:
        M *= int(s)
    out_dtype = x.dtype

    if compute_dtype is not None:
        x = x.astype(compute_dtype)
        w = w.astype(compute_dtype)

    x_flat = x.reshape(M, D)
    bias = b.reshape(1, V).astype(jnp.float32)

    xb = jnp.dtype(x_flat.dtype).itemsize
    wb = jnp.dtype(w.dtype).itemsize
    ob = jnp.dtype(out_dtype).itemsize
    sub = _sublane(x_flat.dtype)

    cap = _vmem_capacity_bytes()
    budget = _vmem_budget_bytes()

    # ---- M tiling (MXU-height, dtype-aware sublane alignment) -----------
    if tile_m is None:
        tile_m = min(256, _round_up(M, sub))
        # Keep >= 2 M tiles when M is large enough so both v7x TensorCores
        # (parallel M axis) get work.
        if M >= 256 and _round_up(M, tile_m) // tile_m < 2:
            tile_m = max(128, _round_up((M + 1) // 2, sub))
    tile_m = max(sub, _round_up(int(tile_m), sub))

    # ---- K (d_model) slab candidates: divisors only, no weight padding --
    if tile_k is not None and D % int(tile_k) == 0:
        tk_cands = [int(tile_k)]
    else:
        tk_cands = _tile_k_candidates(D)

    needs_acc = jnp.dtype(out_dtype) != jnp.dtype(jnp.float32)

    # ---- Path selection --------------------------------------------------
    fused_tk = None
    if not force_v_tiled and tile_v is None:
        for tk in tk_cands:
            if _fused_vmem_bytes(tile_m, tk, V, xb, wb, ob, needs_acc) <= budget:
                fused_tk = tk
                break

    if fused_tk is None:
        Vp128 = _round_up(V, 128)
        if tile_v is not None:
            tv_cands = [int(tile_v)]
        else:
            tv_cands = [t for t in (2048, 1024, 512, 256, 128) if t <= Vp128]
            if not tv_cands:
                tv_cands = [Vp128]
        pick = None
        tm_try = tile_m
        while pick is None:
            for cand_tv in tv_cands:
                for cand_tk in tk_cands:
                    if _vtiled_vmem_bytes(tm_try, cand_tk, cand_tv, xb, wb) <= budget:
                        pick = (tm_try, cand_tk, cand_tv)
                        break
                if pick is not None:
                    break
            if pick is None:
                if tm_try <= sub:
                    # Give up shrinking; smallest config, vmem_limit decides.
                    pick = (tm_try, tk_cands[-1], tv_cands[-1])
                else:
                    tm_try = max(sub, tm_try // 2)
        tile_m, tk_sel, tv_sel = pick

    # ---- Pad M only (zero rows are inert; sliced off afterwards) --------
    Mp = _round_up(M, tile_m)
    if Mp != M:
        x_flat = jnp.pad(x_flat, ((0, Mp - M), (0, 0)))

    # ======================================================================
    # Fused path: full vocab resident per M tile
    # ======================================================================
    if fused_tk is not None:
        tk = fused_tk
        grid = (Mp // tile_m, D // tk)
        est = _fused_vmem_bytes(tile_m, tk, V, xb, wb, ob, needs_acc)
        limit = _vmem_limit(est, cap)

        in_specs = [
            pl.BlockSpec((tile_m, tk), lambda i, k: (i, k)),   # x tile
            pl.BlockSpec((tk, V), lambda i, k: (k, 0)),        # weight K-slab
            pl.BlockSpec((1, V), lambda i, k: (0, 0)),         # bias (constant)
        ]
        out_spec = pl.BlockSpec((tile_m, V), lambda i, k: (i, 0))
        scratch = [pltpu.VMEM((tile_m, V), jnp.float32)] if needs_acc else []
        kernel = _fused_kernel_acc if needs_acc else _fused_kernel_f32out

        out = pl.pallas_call(
            kernel,
            out_shape=jax.ShapeDtypeStruct((Mp, V), out_dtype),
            grid_spec=pltpu.PrefetchScalarGridSpec(
                num_scalar_prefetch=0,
                grid=grid,
                in_specs=in_specs,
                out_specs=out_spec,
                scratch_shapes=scratch,
            ),
            compiler_params=pltpu.CompilerParams(
                dimension_semantics=("parallel", "arbitrary"),
                vmem_limit_bytes=limit,
            ),
        )(x_flat, w, bias)
        return out[:M].reshape(orig_shape[:-1] + (V,))

    # ======================================================================
    # V-tiled path: online logsumexp, then a tiny normalize kernel
    # ======================================================================
    tk, tv = tk_sel, tv_sel
    Vp = _round_up(V, tv)
    if Vp != V:
        # Pad vocab: zero weight columns + very negative bias so padded
        # columns contribute exp(~-1e9) == 0 to the logsumexp.
        w_v = jnp.pad(w, ((0, 0), (0, Vp - V)))
        b_v = jnp.pad(bias, ((0, 0), (0, Vp - V)), constant_values=-1e9)
    else:
        w_v, b_v = w, bias

    est = _vtiled_vmem_bytes(tile_m, tk, tv, xb, wb)
    limit = _vmem_limit(est, cap)
    grid = (Mp // tile_m, Vp // tv, D // tk)

    logits, lse = pl.pallas_call(
        _vtiled_kernel,
        out_shape=(jax.ShapeDtypeStruct((Mp, Vp), jnp.float32),
                   jax.ShapeDtypeStruct((Mp, 1), jnp.float32)),
        grid_spec=pltpu.PrefetchScalarGridSpec(
            num_scalar_prefetch=0,
            grid=grid,
            in_specs=[
                pl.BlockSpec((tile_m, tk), lambda i, j, k: (i, k)),
                pl.BlockSpec((tk, tv), lambda i, j, k: (k, j)),
                pl.BlockSpec((1, tv), lambda i, j, k: (0, j)),
            ],
            out_specs=[
                pl.BlockSpec((tile_m, tv), lambda i, j, k: (i, j)),
                pl.BlockSpec((tile_m, 1), lambda i, j, k: (i, 0)),
            ],
            scratch_shapes=[
                pltpu.VMEM((tile_m, tv), jnp.float32),   # acc
                pltpu.VMEM((tile_m, 1), jnp.float32),    # running max
                pltpu.VMEM((tile_m, 1), jnp.float32),    # running sum-exp
            ],
        ),
        compiler_params=pltpu.CompilerParams(
            dimension_semantics=("parallel", "arbitrary", "arbitrary"),
            vmem_limit_bytes=limit,
        ),
    )(x_flat, w_v, b_v)

    out = pl.pallas_call(
        _normalize_kernel,
        out_shape=jax.ShapeDtypeStruct((Mp, Vp), out_dtype),
        grid_spec=pltpu.PrefetchScalarGridSpec(
            num_scalar_prefetch=0,
            grid=(Mp // tile_m, Vp // tv),
            in_specs=[
                pl.BlockSpec((tile_m, tv), lambda i, j: (i, j)),
                pl.BlockSpec((tile_m, 1), lambda i, j: (i, 0)),
            ],
            out_specs=pl.BlockSpec((tile_m, tv), lambda i, j: (i, j)),
        ),
        compiler_params=pltpu.CompilerParams(
            dimension_semantics=("parallel", "parallel"),
            vmem_limit_bytes=limit,
        ),
    )(logits, lse)

    return out[:M, :V].reshape(orig_shape[:-1] + (V,))


if __name__ == "__main__":
    key = jax.random.PRNGKey(0)
    k1, k2, k3, k4, k5, k6 = jax.random.split(key, 6)

    # ---- Test 1: small Generator shapes (d_model=32, vocab=128), fused path.
    B, S, D, V = 2, 8, 32, 128
    bound = 1.0 / (D ** 0.5)
    w = jax.random.uniform(k2, (D, V), jnp.float32, -bound, bound)
    b = jax.random.uniform(k3, (V,), jnp.float32, -bound, bound)
    x = jax.random.normal(k1, (B, S, D), jnp.float32)

    out = jax.block_until_ready(generator_forward(x, w, b))
    ref = jax.nn.log_softmax(jnp.einsum("bsd,dv->bsv", x, w) + b, axis=-1)
    assert out.shape == (B, S, V)
    assert out.dtype == x.dtype
    assert jnp.allclose(out, ref, atol=1e-5, rtol=1e-5)

    # ---- Test 2: force the V-tiled online-logsumexp path (ragged vocab).
    D2, V2 = 64, 320   # V2 % 128 != 0 -> exercises vocab padding as well
    bound2 = 1.0 / (D2 ** 0.5)
    w_big = jax.random.uniform(k5, (D2, V2), jnp.float32, -bound2, bound2)
    b_big = jax.random.uniform(k6, (V2,), jnp.float32, -bound2, bound2)
    x_big = jax.random.normal(k4, (B, S, D2), jnp.float32)

    out2 = jax.block_until_ready(
        generator_forward(x_big, w_big, b_big, tile_v=128, force_v_tiled=True))
    ref2 = jax.nn.log_softmax(jnp.einsum("bsd,dv->bsv", x_big, w_big) + b_big,
                              axis=-1)
    assert out2.shape == (B, S, V2)
    assert jnp.allclose(out2, ref2, atol=1e-4, rtol=1e-4)

    print("KERNEL_OK")
</pallas_src>

<mosaic_0001>
module attributes {stable_mosaic.version = 11 : i64} {
  func.func @_fused_kernel_f32out(%arg0: i32, %arg1: i32, %arg2: memref<16x32xf32, #tpu.memory_space<vmem>>, %arg3: memref<32x128xf32, #tpu.memory_space<vmem>>, %arg4: memref<1x128xf32, #tpu.memory_space<vmem>>, %arg5: memref<16x128xf32, #tpu.memory_space<vmem>>) attributes {dimension_semantics = [#tpu.dimension_semantics<parallel>, #tpu.dimension_semantics<arbitrary>], iteration_bounds = array<i64: 1, 1>, scalar_prefetch = 0 : i64, scratch_operands = 0 : i64, tpu.core_type = #tpu.core_type<tc>, window_params = [{transform_indices = @transform_0, window_bounds = array<i64: 16, 32>}, {transform_indices = @transform_1, window_bounds = array<i64: 32, 128>}, {pipeline_mode = #tpu.pipeline_mode<synchronous>, transform_indices = @transform_2, window_bounds = array<i64: 1, 128>}, {transform_indices = @transform_3, window_bounds = array<i64: 16, 128>}]} {
    %c0_i32 = arith.constant 0 : i32
    %0 = arith.cmpi eq, %arg1, %c0_i32 : i32
    %1 = arith.extui %0 : i1 to i32
    %c0_i32_0 = arith.constant 0 : i32
    %2 = arith.cmpi ne, %1, %c0_i32_0 : i32
    scf.if %2 {
      %c0_10 = arith.constant 0 : index
      %c0_11 = arith.constant 0 : index
      %12 = vector.load %arg4[%c0_10, %c0_11] : memref<1x128xf32, #tpu.memory_space<vmem>>, vector<1x128xf32>
      %13 = vector.shape_cast %12 : vector<1x128xf32> to vector<1x128xf32>
      %14 = vector.broadcast %13 : vector<1x128xf32> to vector<16x128xf32>
      %c0_12 = arith.constant 0 : index
      %c0_13 = arith.constant 0 : index
      %15 = vector.load %arg5[%c0_12, %c0_13] : memref<16x128xf32, #tpu.memory_space<vmem>>, vector<16x128xf32>
      tpu.vector_store %arg5[%c0_12, %c0_13], %14 {strides = array<i32>} : memref<16x128xf32, #tpu.memory_space<vmem>>, vector<16x128xf32>,
    } else {
    }
    %c0 = arith.constant 0 : index
    %c0_1 = arith.constant 0 : index
    %3 = vector.load %arg5[%c0, %c0_1] : memref<16x128xf32, #tpu.memory_space<vmem>>, vector<16x128xf32>
    %c0_2 = arith.constant 0 : index
    %c0_3 = arith.constant 0 : index
    %4 = vector.load %arg2[%c0_2, %c0_3] : memref<16x32xf32, #tpu.memory_space<vmem>>, vector<16x32xf32>
    %c0_4 = arith.constant 0 : index
    %c0_5 = arith.constant 0 : index
    %5 = vector.load %arg3[%c0_4, %c0_5] : memref<32x128xf32, #tpu.memory_space<vmem>>, vector<32x128xf32>
    %cst = arith.constant dense<0.000000e+00> : vector<16x128xf32>
    %6 = tpu.matmul %4, %5, %cst {dimension_numbers = #tpu.dot_dimension_numbers<[1], [0], [0], [1], [0, 0, 1, 1], [], []>} : vector<16x32xf32>, vector<32x128xf32>, vector<16x128xf32> -> vector<16x128xf32>
    %7 = arith.addf %3, %6 : vector<16x128xf32>
    %c0_6 = arith.constant 0 : index
    %c0_7 = arith.constant 0 : index
    %8 = vector.load %arg5[%c0_6, %c0_7] : memref<16x128xf32, #tpu.memory_space<vmem>>, vector<16x128xf32>
    tpu.vector_store %arg5[%c0_6, %c0_7], %7 {strides = array<i32>} : memref<16x128xf32, #tpu.memory_space<vmem>>, vector<16x128xf32>,
    %c0_i32_8 = arith.constant 0 : i32
    %9 = arith.cmpi eq, %arg1, %c0_i32_8 : i32
    %10 = arith.extui %9 : i1 to i32
    %c0_i32_9 = arith.constant 0 : i32
    %11 = arith.cmpi ne, %10, %c0_i32_9 : i32
    scf.if %11 {
      %c0_10 = arith.constant 0 : index
      %c0_11 = arith.constant 0 : index
      %12 = vector.load %arg5[%c0_10, %c0_11] : memref<16x128xf32, #tpu.memory_space<vmem>>, vector<16x128xf32>
      %cst_12 = arith.constant dense<0xFF800000> : vector<16xf32>
      %13 = vector.multi_reduction <maximumf>, %12, %cst_12 [1] : vector<16x128xf32> to vector<16xf32>
      %14 = vector.shape_cast %13 : vector<16xf32> to vector<16x1xf32>
      %15 = vector.broadcast %14 : vector<16x1xf32> to vector<16x128xf32>
      %16 = arith.subf %12, %15 : vector<16x128xf32>
      %17 = math.exp %16 : vector<16x128xf32>
      %cst_13 = arith.constant dense<0.000000e+00> : vector<16xf32>
      %18 = vector.multi_reduction <add>, %17, %cst_13 [1] : vector<16x128xf32> to vector<16xf32>
      %19 = vector.shape_cast %18 : vector<16xf32> to vector<16x1xf32>
      %20 = math.log %19 : vector<16x1xf32>
      %21 = vector.broadcast %20 : vector<16x1xf32> to vector<16x128xf32>
      %22 = arith.subf %16, %21 : vector<16x128xf32>
      %c0_14 = arith.constant 0 : index
      %c0_15 = arith.constant 0 : index
      %23 = vector.load %arg5[%c0_14, %c0_15] : memref<16x128xf32, #tpu.memory_space<vmem>>, vector<16x128xf32>
      tpu.vector_store %arg5[%c0_14, %c0_15], %22 {strides = array<i32>} : memref<16x128xf32, #tpu.memory_space<vmem>>, vector<16x128xf32>,
    } else {
    }
    return
  }
  func.func @transform_0(%arg0: i32, %arg1: i32) -> (i32, i32) {
    %c0_i32 = arith.constant 0 : i32
    return %arg0, %arg1 : i32, i32
  }
  func.func @transform_1(%arg0: i32, %arg1: i32) -> (i32, i32) {
    %c0_i32 = arith.constant 0 : i32
    %c0_i32_0 = arith.constant 0 : i32
    return %arg1, %c0_i32 : i32, i32
  }
  func.func @transform_2(%arg0: i32, %arg1: i32) -> (i32, i32) {
    %c0_i32 = arith.constant 0 : i32
    %c0_i32_0 = arith.constant 0 : i32
    %c0_i32_1 = arith.constant 0 : i32
    return %c0_i32, %c0_i32_0 : i32, i32
  }
  func.func @transform_3(%arg0: i32, %arg1: i32) -> (i32, i32) {
    %c0_i32 = arith.constant 0 : i32
    %c0_i32_0 = arith.constant 0 : i32
    return %arg0, %c0_i32 : i32, i32
  }
}

</mosaic_0001>

<llo_original>
// kernel: tpu_custom_call.1
$region0: #{tpu_custom_call.1}
  #allocation0 [shape = 'u32[]', space=smem, size = 0x4, offset = 0x4, fixed_abs, tag = 'smem constant byte address 0x4 - core index']
  #allocation1 [shape = 'u32[144,128]{1,0:T(1,128)}', space=vmem, size = 0x12000, scoped, tag = 'internal scratch']
  %s0 = inlined_call_operand.hbm [shape: f32[16,32], index: 0, kind: input, shape index: {}]
  %s1 = inlined_call_operand.hbm [shape: f32[32,128], index: 1, kind: input, shape index: {}]
  %s2 = inlined_call_operand.vmem [shape: f32[1,128], index: 2, kind: input, shape index: {}]
  %s3 = inlined_call_operand.hbm [shape: f32[16,128], index: 3, kind: output, shape index: {}]
  %s4 = sld [smem:[#allocation0]]
  $region38: #{tpu_custom_call.1} parent=0
    _
  %s6 = ssub.s32 1, %s4
  %s7 = scalar_select 0, %s6, %s4
  $region1: #{tpu_custom_call.1} parent=0
    #allocation2 [shape = 'u8[8192]{0}', space=vmem, size = 0x2000, scoped, tag = 'input window, operand 0, single buffered']
    #allocation3 [shape = 's32[1]{0}', space=sflag, size = 0x4, scoped, tag = 'scoped memory for tpu_custom_call.1']
    #allocation4 [shape = 's32[1]{0}', space=sflag, size = 0x4, scoped, tag = 'scoped memory for tpu_custom_call.1']
    #allocation5 [shape = 'u8[16384]{0}', space=vmem, size = 0x4000, scoped, tag = 'input window, operand 1, single buffered']
    #allocation6 [shape = 's32[1]{0}', space=sflag, size = 0x4, scoped, tag = 'scoped memory for tpu_custom_call.1']
    #allocation7 [shape = 'u8[8192]{0}', space=vmem, size = 0x2000, scoped, tag = 'output window, operand 0, single buffered']
    %8 = vsyncpa [#allocation3], 0
    %9 = vsyncpa [#allocation6], 0
    %10 = vsyncpa [#allocation4], 0
    // Predicated region
    $region2: #{tpu_custom_call.1} parent=1 // pred_check
      _
    $region3: #{tpu_custom_call.1} parent=1 // pred_check_branch
      %12 = sbr.rel (0) target = $region5
    $region4: #{tpu_custom_call.1} parent=1 // pred_region
      %s14 = ssub.s32 256, 256
      %15 = vsyncadd [#allocation3], %s14
      %s16 = sshll.u32 [#allocation2], 4
      %s17 = int_to_ptr.vmem [resolvable:$true] %s16
      %22 = dma.hbm_to_vmem [thread:$0]  %s0, 256, %s17, [#allocation3], 128, 128, 8
    $region5: #{tpu_custom_call.1} parent=1 // pred_fallthru
      _
    // Predicated region
    $region6: #{tpu_custom_call.1} parent=1 // pred_check
      _
    $region7: #{tpu_custom_call.1} parent=1 // pred_check_branch
      %24 = sbr.rel (0) target = $region9
    $region8: #{tpu_custom_call.1} parent=1 // pred_region
      %s26 = ssub.s32 512, 512
      %27 = vsyncadd [#allocation6], %s26
      %s28 = sshll.u32 [#allocation5], 4
      %s29 = int_to_ptr.vmem [resolvable:$true] %s28
      %34 = dma.hbm_to_vmem [thread:$0]  %s1, 512, %s29, [#allocation6], 128, 128, 8
    $region9: #{tpu_custom_call.1} parent=1 // pred_fallthru
      _
    // Predicated region
    $region10: #{tpu_custom_call.1} parent=1 // pred_check
      _
    $region11: #{tpu_custom_call.1} parent=1 // pred_check_branch
      %36 = sbr.rel (0) target = $region13
    $region12: #{tpu_custom_call.1} parent=1 // pred_region
      _
    $region13: #{tpu_custom_call.1} parent=1 // pred_fallthru
      _
    // Predicated region
    $region14: #{tpu_custom_call.1} parent=1 // pred_check
      _
    $region15: #{tpu_custom_call.1} parent=1 // pred_check_branch
      %38 = sbr.rel (0) target = $region17
    $region16: #{tpu_custom_call.1} parent=1 // pred_region
      %39 = dma.done [#allocation3], 256
    $region17: #{tpu_custom_call.1} parent=1 // pred_fallthru
      _
    // Predicated region
    $region18: #{tpu_custom_call.1} parent=1 // pred_check
      _
    $region19: #{tpu_custom_call.1} parent=1 // pred_check_branch
      %41 = sbr.rel (0) target = $region21
    $region20: #{tpu_custom_call.1} parent=1 // pred_region
      %42 = dma.done [#allocation6], 512
    $region21: #{tpu_custom_call.1} parent=1 // pred_fallthru
      _
    %p43 = scmp.eq.s32.totalorder 0, 0
    // Predicated region
    $region22: #{tpu_custom_call.1} parent=1 // pred_check
      %p44 = pneg %p43
    $region23: #{tpu_custom_call.1} parent=1 // pred_check_branch
      %46 = sbr.rel (%p44) target = $region25
    $region24: #{tpu_custom_call.1} parent=1 // pred_region
      %v47 = vld [vmem:[%s2] sm:$0x1]
      %v49 = vlaneseq
      %v50 = vshrl.u32 %v49, 7
      %v51 = vsub.s32 0, %v50
      %v52 = vrot.slane %v47, %v51
      %54 = vst [vmem:[#allocation7] sm:$0xff] %v52
      %55 = vst [vmem:[#allocation7 + $0x8] sm:$0xff] %v52
    $region25: #{tpu_custom_call.1} parent=1 // pred_fallthru
      _
    %v56 = vld [vmem:[#allocation7] sm:$0xff]
    %v57 = vld [vmem:[#allocation7 + $0x8] sm:$0xff]
    %v58 = vld [vmem:[#allocation2] sm:$0xff]
    %v59 = vld [vmem:[#allocation2 + $0x8] sm:$0xff]
    %v60 = vld [vmem:[#allocation5] sm:$0xff]
    %v61 = vld [vmem:[#allocation5 + $0x8] sm:$0xff]
    %v62 = vld [vmem:[#allocation5 + $0x10] sm:$0xff]
    %v63 = vld [vmem:[#allocation5 + $0x18] sm:$0xff]
    %vm64 = vcmask 261120
    %v66 = vsel %vm64, %v58, 0
    %v69 = vsel %vm64, %v59, 0
    %71 = vmatprep.subr.mxu0 0.0
    %72 = vmatpush1.msra.mxu0 %v60
    %73 = vmatprep.subr.mxu0 0.0
    %74 = vmatpush1.msra.mxu0 %v61
    %75 = vmatprep.subr.mxu0 0.0
    %76 = vmatpush1.msra.mxu0 %v62
    %77 = vmatprep.subr.mxu0 0.0
    %78 = vmatpush1.msra.mxu0 %v63
    %79 = vmatprep.subr.mxu0 0.0
    %80 = vmatpush1.msra.mxu0 0.0
    %81 = vmatprep.subr.mxu0 0.0
    %82 = vmatpush1.msra.mxu0 0.0
    %83 = vmatprep.subr.mxu0 0.0
    %84 = vmatpush1.msra.mxu0 0.0
    %85 = vmatprep.subr.mxu0 0.0
    %86 = vmatpush1.msra.mxu0 0.0
    %87 = vmatprep.subr.mxu0 0.0
    %88 = vmatpush1.msra.mxu0 0.0
    %89 = vmatprep.subr.mxu0 0.0
    %90 = vmatpush1.msra.mxu0 0.0
    %91 = vmatprep.subr.mxu0 0.0
    %92 = vmatpush1.msra.mxu0 0.0
    %93 = vmatprep.subr.mxu0 0.0
    %94 = vmatpush1.msra.mxu0 0.0
    %95 = vmatprep.subr.mxu0 0.0
    %96 = vmatpush1.msra.mxu0 0.0
    %97 = vmatprep.subr.mxu0 0.0
    %98 = vmatpush1.msra.mxu0 0.0
    %99 = vmatprep.subr.mxu0 0.0
    %100 = vmatpush1.msra.mxu0 0.0
    %101 = vmatprep.subr.mxu0 0.0
    %102 = vmatpush1.msra.mxu0 0.0
    %103 = vmatprep.subr.mxu0 0.0
    %104 = vmatpush1.msra.mxu0 0.0
    %105 = vmatprep.subr.mxu0 0.0
    %106 = vmatpush1.msra.mxu0 0.0
    %107 = vmatprep.subr.mxu0 0.0
    %108 = vmatpush1.msra.mxu0 0.0
    %109 = vmatprep.subr.mxu0 0.0
    %110 = vmatpush1.msra.mxu0 0.0
    %111 = vmatprep.subr.mxu0 0.0
    %112 = vmatpush1.msra.mxu0 0.0
    %113 = vmatprep.subr.mxu0 0.0
    %114 = vmatpush1.msra.mxu0 0.0
    %115 = vmatprep.subr.mxu0 0.0
    %116 = vmatpush1.msra.mxu0 0.0
    %117 = vmatprep.subr.mxu0 0.0
    %118 = vmatpush1.msra.mxu0 0.0
    %119 = vmatprep.subr.mxu0 0.0
    %120 = vmatpush1.msra.mxu0 0.0
    %121 = vmatprep.subr.mxu0 0.0
    %122 = vmatpush1.msra.mxu0 0.0
    %123 = vmatprep.subr.mxu0 0.0
    %124 = vmatpush1.msra.mxu0 0.0
    %125 = vmatprep.subr.mxu0 0.0
    %126 = vmatpush1.msra.mxu0 0.0
    %127 = vmatprep.subr.mxu0 0.0
    %128 = vmatpush1.msra.mxu0 0.0
    %129 = vmatprep.subr.mxu0 0.0
    %130 = vmatpush1.msra.mxu0 0.0
    %131 = vmatprep.subr.mxu0 0.0
    %132 = vmatpush1.msra.mxu0 0.0
    %133 = vmatprep.subr.mxu0 0.0
    %134 = vmatpush1.msra.mxu0 0.0
    %135 = vmatprep.mubr.f32.mxu0 0.0
    %136 = vmatmul.mubr.f32.gmra.mrb[0].mxu0 %v66
    %v137 = vpop.f32.mrb[0].mxu0
    %v138 = vadd.f32 0.0, %v137
    %v139 = vpop.f32.mrb[0].mxu0
    %140 = vmatprep.mubr.f32.mxu0 0.0
    %141 = vmatmul.mubr.f32.gmra.mrb[0].mxu0 %v69
    %v142 = vpop.f32.mrb[0].mxu0
    %v143 = vadd.f32 0.0, %v142
    %v144 = vpop.f32.mrb[0].mxu0
    %145 = vdwg.mxu0
    %v146 = vadd.f32 %v56, %v138
    %v147 = vadd.f32 %v57, %v143
    %148 = vst [vmem:[#allocation7] sm:$0xff] %v146
    %149 = vst [vmem:[#allocation7 + $0x8] sm:$0xff] %v147
    // Predicated region
    $region26: #{tpu_custom_call.1} parent=1 // pred_check
      %p150 = pneg %p43
    $region27: #{tpu_custom_call.1} parent=1 // pred_check_branch
      %152 = sbr.rel (%p150) target = $region29
    $region28: #{tpu_custom_call.1} parent=1 // pred_region
      %v153 = vld [vmem:[#allocation7] sm:$0xff]
      %v154 = vld [vmem:[#allocation7 + $0x8] sm:$0xff]
      %155 = vmax.xlane.f32.xlu0 %v153
      %v156 = vpop.xlane.xlu0 %155
      %157 = vmax.xlane.f32.xlu0 %v154
      %v158 = vpop.xlane.xlu0 %157
      %v159 = vsub.f32 %v153, %v156
      %v160 = vsub.f32 %v154, %v158
      %v161 = vmul.f32 %v159, 1.442695
      %v162 = vpow.pop %v161
      %v163 = vmul.f32 %v160, 1.442695
      %v164 = vpow.pop %v163
      %165 = vadd.xlane.f32.xlu0 %v162
      %v166 = vpop.xlane.xlu0 %165
      %167 = vadd.xlane.f32.xlu0 %v164
      %v168 = vpop.xlane.xlu0 %167
      %v169 = vlog2.pop %v166
      %v170 = vmul.f32 %v169, 0.6931472
      %v171 = vlog2.pop %v168
      %v172 = vmul.f32 %v171, 0.6931472
      %v173 = vsub.f32 %v159, %v170
      %v174 = vsub.f32 %v160, %v172
      %175 = vst [vmem:[#allocation7] sm:$0xff] %v173
      %176 = vst [vmem:[#allocation7 + $0x8] sm:$0xff] %v174
    $region29: #{tpu_custom_call.1} parent=1 // pred_fallthru
      _
    // Predicated region
    $region30: #{tpu_custom_call.1} parent=1 // pred_check
      _
    $region31: #{tpu_custom_call.1} parent=1 // pred_check_branch
      %178 = sbr.rel (0) target = $region33
    $region32: #{tpu_custom_call.1} parent=1 // pred_region
      %s180 = ssub.s32 256, 256
      %181 = vsyncadd [#allocation4], %s180
      %s182 = sshll.u32 [#allocation7], 4
      %s183 = int_to_ptr.vmem [resolvable:$true] %s182
      %188 = dma.vmem_to_hbm [thread:$0]  %s183, 256, %s3, [#allocation4], 128, 128, 8
    $region33: #{tpu_custom_call.1} parent=1 // pred_fallthru
      _
    // Predicated region
    $region34: #{tpu_custom_call.1} parent=1 // pred_check
      _
    $region35: #{tpu_custom_call.1} parent=1 // pred_check_branch
      %190 = sbr.rel (0) target = $region37
    $region36: #{tpu_custom_call.1} parent=1 // pred_region
      %191 = dma.done [#allocation4], 256
    $region37: #{tpu_custom_call.1} parent=1 // pred_fallthru
      _
    %192 = vsyncpa [#allocation3], 1
    %193 = vsyncpa [#allocation6], 1
    %194 = vsyncpa [#allocation4], 1

</llo_original>
